<compile_context>
chip_gen: v7x
topology: tpu7x:2x2x1
jax: 0.10.0
libtpu: 0.0.40
codegen_flags: <defaults>
</compile_context>

<pallas_src>
import jax
import jax.numpy as jnp
from jax.experimental import pallas as pl
from jax.experimental.pallas import tpu as pltpu

GAMMA = 2.0       # focal gamma (fixed at 2 in the module)
SMOOTH = 1e-5     # dice smoothing (smooth_nr == smooth_dr)


def _round_up(x, m):
    return ((x + m - 1) // m) * m


def _cdiv(a, b):
    return (a + b - 1) // b


def _make_kernel(mask_psum):
    """Grid = (N, n_split, tiles_per_split); last axis is the reduction."""

    def kernel(pred_ref, lbl_ref,
               inter_ref, psum_ref, tsum_ref, focal_ref,
               inter_acc, psum_acc, tsum_acc, focal_acc):
        s_idx = pl.program_id(2)

        @pl.when(s_idx == 0)
        def _init():
            inter_acc[...] = jnp.zeros_like(inter_acc)
            psum_acc[...] = jnp.zeros_like(psum_acc)
            tsum_acc[...] = jnp.zeros_like(tsum_acc)
            focal_acc[...] = jnp.zeros_like(focal_acc)

        logits = pred_ref[0].astype(jnp.float32)     # (C, TILE)
        lab = lbl_ref[0]                             # (1, TILE) int32

        # one-hot target rebuilt on the fly (padding lanes have lab == -1)
        ci = jax.lax.broadcasted_iota(jnp.int32, logits.shape, 0)
        onehot = (ci == lab).astype(jnp.float32)     # (C, TILE)

        # softmax / -log-softmax over the channel (sublane) axis
        m = jnp.max(logits, axis=0, keepdims=True)   # (1, TILE)
        shifted = logits - m
        e = jnp.exp(shifted)
        denom = jnp.sum(e, axis=0, keepdims=True)    # (1, TILE)
        p = e * pl.reciprocal(denom)                 # exact reciprocal
        neg_logp = jnp.log(denom) - shifted          # (C, TILE)

        # element-wise accumulation (VPU only; XLU reduce deferred to the end)
        inter_acc[...] += p * onehot
        if mask_psum:
            psum_acc[...] += p * (lab >= 0).astype(jnp.float32)
        else:
            psum_acc[...] += p
        tsum_acc[...] += onehot
        omp = 1.0 - p
        focal_acc[...] += (omp * omp) * neg_logp * onehot

        @pl.when(s_idx == pl.num_programs(2) - 1)
        def _fin():
            inter_ref[...] = jnp.sum(inter_acc[...], axis=1,
                                     keepdims=True)[None, None]
            psum_ref[...] = jnp.sum(psum_acc[...], axis=1,
                                    keepdims=True)[None, None]
            tsum_ref[...] = jnp.sum(tsum_acc[...], axis=1,
                                    keepdims=True)[None, None]
            f = jnp.sum(focal_acc[...], axis=1, keepdims=True)     # (C, 1)
            focal_ref[...] = jnp.sum(f, axis=0, keepdims=True)[None, None]

    return kernel


def task1_loss(pred, target, *, max_spatial_tile=32768, spatial_splits=None):
    """pred: (N, C, H, W) logits (any float dtype).
    target: (N, C, H, W) one-hot OR (N, H, W) integer labels."""
    N, C, H, W = pred.shape
    S = H * W

    if target.ndim == 4:
        labels = jnp.argmax(target, axis=1)
    else:
        labels = target
    labels = labels.astype(jnp.int32).reshape(N, 1, S)
    pred_r = pred.reshape(N, C, S)

    # ---- tile / split selection (VMEM-budget aware) ----
    pred_bytes = jnp.dtype(pred.dtype).itemsize
    # 4 f32 scratch slabs + double-buffered pred + double-buffered labels
    per_lane_bytes = 4 * C * 4 + 2 * C * pred_bytes + 2 * 4
    vmem_budget = 12 * 1024 * 1024          # fits v5e default scoped limit
    cap = max(128, (vmem_budget // per_lane_bytes) // 128 * 128)
    tile = min(int(max_spatial_tile), cap, _round_up(S, 128))
    tile = max(128, (tile // 128) * 128)

    if spatial_splits is None:
        spatial_splits = 2 if N == 1 else 1  # keep both v7x cores busy at N=1
    n_split = max(1, min(int(spatial_splits), _cdiv(S, tile)))

    chunk = tile * n_split
    S_pad = _round_up(S, chunk)
    tiles_per_split = S_pad // chunk

    if S_pad != S:
        pad = S_pad - S
        pred_r = jnp.pad(pred_r, ((0, 0), (0, 0), (0, pad)))
        labels = jnp.pad(labels, ((0, 0), (0, 0), (0, pad)),
                         constant_values=-1)

    kernel = _make_kernel(mask_psum=(S_pad != S))

    pred_spec = pl.BlockSpec(
        (1, C, tile), lambda n, sp, s: (n, 0, sp * tiles_per_split + s))
    lbl_spec = pl.BlockSpec(
        (1, 1, tile), lambda n, sp, s: (n, 0, sp * tiles_per_split + s))

    inter, psum, tsum, focal = pl.pallas_call(
        kernel,
        out_shape=(
            jax.ShapeDtypeStruct((N, n_split, C, 1), jnp.float32),
            jax.ShapeDtypeStruct((N, n_split, C, 1), jnp.float32),
            jax.ShapeDtypeStruct((N, n_split, C, 1), jnp.float32),
            jax.ShapeDtypeStruct((N, n_split, 1, 1), jnp.float32),
        ),
        grid_spec=pltpu.PrefetchScalarGridSpec(
            num_scalar_prefetch=0,
            grid=(N, n_split, tiles_per_split),
            in_specs=[pred_spec, lbl_spec],
            out_specs=[
                pl.BlockSpec((1, 1, C, 1), lambda n, sp, s: (n, sp, 0, 0)),
                pl.BlockSpec((1, 1, C, 1), lambda n, sp, s: (n, sp, 0, 0)),
                pl.BlockSpec((1, 1, C, 1), lambda n, sp, s: (n, sp, 0, 0)),
                pl.BlockSpec((1, 1, 1, 1), lambda n, sp, s: (n, sp, 0, 0)),
            ],
            scratch_shapes=[
                pltpu.VMEM((C, tile), jnp.float32),
                pltpu.VMEM((C, tile), jnp.float32),
                pltpu.VMEM((C, tile), jnp.float32),
                pltpu.VMEM((C, tile), jnp.float32),
            ],
        ),
        compiler_params=pltpu.CompilerParams(
            dimension_semantics=("parallel", "parallel", "arbitrary"),
            vmem_limit_bytes=32 * 1024 * 1024),
    )(pred_r, labels)

    # ---- tiny finalization in plain JAX ----
    inter = jnp.sum(inter[..., 0], axis=1)   # (N, C): combine spatial splits
    psum = jnp.sum(psum[..., 0], axis=1)
    tsum = jnp.sum(tsum[..., 0], axis=1)
    focal_total = jnp.sum(focal)

    inter_fg = inter[:, 1:]                  # drop background class
    psum_fg = psum[:, 1:]
    tsum_fg = tsum[:, 1:]
    dice = 1.0 - (2.0 * inter_fg + SMOOTH) / (psum_fg + tsum_fg + SMOOTH)
    dice_loss = jnp.mean(dice)

    focal_loss = focal_total / (N * S)       # mean over *real* pixels

    return 0.7 * dice_loss + 0.3 * focal_loss


def _reference_loss(pred, target_onehot):
    """Pure-JAX reference for correctness checking."""
    p = jax.nn.softmax(pred, axis=1)
    logp = jax.nn.log_softmax(pred, axis=1)
    axes = (2, 3)
    inter = jnp.sum(p * target_onehot, axis=axes)[:, 1:]
    psum = jnp.sum(p, axis=axes)[:, 1:]
    tsum = jnp.sum(target_onehot, axis=axes)[:, 1:]
    dice_loss = jnp.mean(1.0 - (2.0 * inter + SMOOTH) / (psum + tsum + SMOOTH))
    focal = -jnp.sum(target_onehot * (1.0 - p) ** GAMMA * logp, axis=1)
    focal_loss = jnp.mean(focal)
    return 0.7 * dice_loss + 0.3 * focal_loss


if __name__ == "__main__":
    key = jax.random.PRNGKey(0)
    k1, k2, k3, k4 = jax.random.split(key, 4)

    # Case 1: small, no padding needed, one-hot target (module interface).
    N, C, H, W = 2, 4, 16, 16
    pred = jax.random.normal(k1, (N, C, H, W), dtype=jnp.float32)
    labels = jax.random.randint(k2, (N, H, W), 0, C)
    target = jax.nn.one_hot(labels, C, axis=1, dtype=jnp.float32)
    loss = jax.block_until_ready(task1_loss(pred, target))
    ref = _reference_loss(pred, target)
    assert jnp.allclose(loss, ref, atol=1e-5, rtol=1e-4), (loss, ref)

    # Case 2: N=1 (spatial split for megacore), spatial size that needs
    # padding under the chosen tile, integer-label target path.
    N2, C2, H2, W2 = 1, 4, 48, 48
    pred2 = jax.random.normal(k3, (N2, C2, H2, W2), dtype=jnp.float32)
    labels2 = jax.random.randint(k4, (N2, H2, W2), 0, C2)
    target2 = jax.nn.one_hot(labels2, C2, axis=1, dtype=jnp.float32)
    loss2 = jax.block_until_ready(
        task1_loss(pred2, labels2, max_spatial_tile=512, spatial_splits=2))
    ref2 = _reference_loss(pred2, target2)
    assert jnp.allclose(loss2, ref2, atol=1e-5, rtol=1e-4), (loss2, ref2)

    print("KERNEL_OK")
</pallas_src>

<mosaic_0001>
module attributes {stable_mosaic.version = 11 : i64} {
  func.func @kernel(%arg0: i32, %arg1: i32, %arg2: i32, %arg3: memref<1x4x256xf32, #tpu.memory_space<vmem>>, %arg4: memref<1x1x256xi32, #tpu.memory_space<vmem>>, %arg5: memref<1x1x4x1xf32, #tpu.memory_space<vmem>>, %arg6: memref<1x1x4x1xf32, #tpu.memory_space<vmem>>, %arg7: memref<1x1x4x1xf32, #tpu.memory_space<vmem>>, %arg8: memref<1x1x1x1xf32, #tpu.memory_space<vmem>>, %arg9: memref<4x256xf32, #tpu.memory_space<vmem>>, %arg10: memref<4x256xf32, #tpu.memory_space<vmem>>, %arg11: memref<4x256xf32, #tpu.memory_space<vmem>>, %arg12: memref<4x256xf32, #tpu.memory_space<vmem>>) attributes {dimension_semantics = [#tpu.dimension_semantics<parallel>, #tpu.dimension_semantics<parallel>, #tpu.dimension_semantics<arbitrary>], iteration_bounds = array<i64: 2, 1, 1>, scalar_prefetch = 0 : i64, scratch_operands = 4 : i64, tpu.core_type = #tpu.core_type<tc>, window_params = [{transform_indices = @transform_0, window_bounds = array<i64: 1, 4, 256>}, {transform_indices = @transform_1, window_bounds = array<i64: 1, 1, 256>}, {transform_indices = @transform_2, window_bounds = array<i64: 1, 1, 4, 1>}, {transform_indices = @transform_3, window_bounds = array<i64: 1, 1, 4, 1>}, {transform_indices = @transform_4, window_bounds = array<i64: 1, 1, 4, 1>}, {transform_indices = @transform_5, window_bounds = array<i64: 1, 1, 1, 1>}]} {
    %c0_i32 = arith.constant 0 : i32
    %0 = arith.cmpi eq, %arg2, %c0_i32 : i32
    %1 = arith.extui %0 : i1 to i32
    %c0_i32_0 = arith.constant 0 : i32
    %2 = arith.cmpi ne, %1, %c0_i32_0 : i32
    scf.if %2 {
      %cst_26 = arith.constant 0.000000e+00 : f32
      %46 = vector.broadcast %cst_26 : f32 to vector<4x256xf32>
      %c0_27 = arith.constant 0 : index
      %c0_28 = arith.constant 0 : index
      %47 = vector.load %arg9[%c0_27, %c0_28] : memref<4x256xf32, #tpu.memory_space<vmem>>, vector<4x256xf32>
      tpu.vector_store %arg9[%c0_27, %c0_28], %46 {strides = array<i32>} : memref<4x256xf32, #tpu.memory_space<vmem>>, vector<4x256xf32>,
      %cst_29 = arith.constant 0.000000e+00 : f32
      %48 = vector.broadcast %cst_29 : f32 to vector<4x256xf32>
      %c0_30 = arith.constant 0 : index
      %c0_31 = arith.constant 0 : index
      %49 = vector.load %arg10[%c0_30, %c0_31] : memref<4x256xf32, #tpu.memory_space<vmem>>, vector<4x256xf32>
      tpu.vector_store %arg10[%c0_30, %c0_31], %48 {strides = array<i32>} : memref<4x256xf32, #tpu.memory_space<vmem>>, vector<4x256xf32>,
      %cst_32 = arith.constant 0.000000e+00 : f32
      %50 = vector.broadcast %cst_32 : f32 to vector<4x256xf32>
      %c0_33 = arith.constant 0 : index
      %c0_34 = arith.constant 0 : index
      %51 = vector.load %arg11[%c0_33, %c0_34] : memref<4x256xf32, #tpu.memory_space<vmem>>, vector<4x256xf32>
      tpu.vector_store %arg11[%c0_33, %c0_34], %50 {strides = array<i32>} : memref<4x256xf32, #tpu.memory_space<vmem>>, vector<4x256xf32>,
      %cst_35 = arith.constant 0.000000e+00 : f32
      %52 = vector.broadcast %cst_35 : f32 to vector<4x256xf32>
      %c0_36 = arith.constant 0 : index
      %c0_37 = arith.constant 0 : index
      %53 = vector.load %arg12[%c0_36, %c0_37] : memref<4x256xf32, #tpu.memory_space<vmem>>, vector<4x256xf32>
      tpu.vector_store %arg12[%c0_36, %c0_37], %52 {strides = array<i32>} : memref<4x256xf32, #tpu.memory_space<vmem>>, vector<4x256xf32>,
    } else {
    }
    %c0 = arith.constant 0 : index
    %c0_1 = arith.constant 0 : index
    %c0_2 = arith.constant 0 : index
    %3 = vector.load %arg3[%c0, %c0_1, %c0_2] : memref<1x4x256xf32, #tpu.memory_space<vmem>>, vector<1x4x256xf32>
    %4 = vector.shape_cast %3 : vector<1x4x256xf32> to vector<4x256xf32>
    %c0_3 = arith.constant 0 : index
    %c0_4 = arith.constant 0 : index
    %c0_5 = arith.constant 0 : index
    %5 = vector.load %arg4[%c0_3, %c0_4, %c0_5] : memref<1x1x256xi32, #tpu.memory_space<vmem>>, vector<1x1x256xi32>
    %6 = vector.shape_cast %5 : vector<1x1x256xi32> to vector<1x256xi32>
    %7 = tpu.iota {dimensions = array<i32: 0>} : vector<4x256xi32>
    %8 = vector.broadcast %6 : vector<1x256xi32> to vector<4x256xi32>
    %9 = arith.cmpi eq, %7, %8 : vector<4x256xi32>
    %10 = arith.extui %9 : vector<4x256xi1> to vector<4x256xi32>
    %11 = arith.sitofp %10 : vector<4x256xi32> to vector<4x256xf32>
    %cst = arith.constant dense<0xFF800000> : vector<256xf32>
    %12 = vector.multi_reduction <maximumf>, %4, %cst [0] : vector<4x256xf32> to vector<256xf32>
    %13 = vector.shape_cast %12 : vector<256xf32> to vector<1x256xf32>
    %14 = vector.broadcast %13 : vector<1x256xf32> to vector<4x256xf32>
    %15 = arith.subf %4, %14 : vector<4x256xf32>
    %16 = math.exp %15 : vector<4x256xf32>
    %cst_6 = arith.constant dense<0.000000e+00> : vector<256xf32>
    %17 = vector.multi_reduction <add>, %16, %cst_6 [0] : vector<4x256xf32> to vector<256xf32>
    %18 = vector.shape_cast %17 : vector<256xf32> to vector<1x256xf32>
    %19 = tpu.reciprocal %18 : vector<1x256xf32> -> vector<1x256xf32>
    %20 = vector.broadcast %19 : vector<1x256xf32> to vector<4x256xf32>
    %21 = arith.mulf %16, %20 : vector<4x256xf32>
    %22 = math.log %18 : vector<1x256xf32>
    %23 = vector.broadcast %22 : vector<1x256xf32> to vector<4x256xf32>
    %24 = arith.subf %23, %15 : vector<4x256xf32>
    %c0_7 = arith.constant 0 : index
    %c0_8 = arith.constant 0 : index
    %25 = vector.load %arg9[%c0_7, %c0_8] : memref<4x256xf32, #tpu.memory_space<vmem>>, vector<4x256xf32>
    %26 = arith.mulf %21, %11 : vector<4x256xf32>
    %27 = arith.addf %25, %26 : vector<4x256xf32>
    %c0_9 = arith.constant 0 : index
    %c0_10 = arith.constant 0 : index
    %28 = vector.load %arg9[%c0_9, %c0_10] : memref<4x256xf32, #tpu.memory_space<vmem>>, vector<4x256xf32>
    tpu.vector_store %arg9[%c0_9, %c0_10], %27 {strides = array<i32>} : memref<4x256xf32, #tpu.memory_space<vmem>>, vector<4x256xf32>,
    %c0_11 = arith.constant 0 : index
    %c0_12 = arith.constant 0 : index
    %29 = vector.load %arg10[%c0_11, %c0_12] : memref<4x256xf32, #tpu.memory_space<vmem>>, vector<4x256xf32>
    %30 = arith.addf %29, %21 : vector<4x256xf32>
    %c0_13 = arith.constant 0 : index
    %c0_14 = arith.constant 0 : index
    %31 = vector.load %arg10[%c0_13, %c0_14] : memref<4x256xf32, #tpu.memory_space<vmem>>, vector<4x256xf32>
    tpu.vector_store %arg10[%c0_13, %c0_14], %30 {strides = array<i32>} : memref<4x256xf32, #tpu.memory_space<vmem>>, vector<4x256xf32>,
    %c0_15 = arith.constant 0 : index
    %c0_16 = arith.constant 0 : index
    %32 = vector.load %arg11[%c0_15, %c0_16] : memref<4x256xf32, #tpu.memory_space<vmem>>, vector<4x256xf32>
    %33 = arith.addf %32, %11 : vector<4x256xf32>
    %c0_17 = arith.constant 0 : index
    %c0_18 = arith.constant 0 : index
    %34 = vector.load %arg11[%c0_17, %c0_18] : memref<4x256xf32, #tpu.memory_space<vmem>>, vector<4x256xf32>
    tpu.vector_store %arg11[%c0_17, %c0_18], %33 {strides = array<i32>} : memref<4x256xf32, #tpu.memory_space<vmem>>, vector<4x256xf32>,
    %cst_19 = arith.constant 1.000000e+00 : f32
    %35 = vector.broadcast %cst_19 : f32 to vector<4x256xf32>
    %36 = arith.subf %35, %21 : vector<4x256xf32>
    %c0_20 = arith.constant 0 : index
    %c0_21 = arith.constant 0 : index
    %37 = vector.load %arg12[%c0_20, %c0_21] : memref<4x256xf32, #tpu.memory_space<vmem>>, vector<4x256xf32>
    %38 = arith.mulf %36, %36 : vector<4x256xf32>
    %39 = arith.mulf %38, %24 : vector<4x256xf32>
    %40 = arith.mulf %39, %11 : vector<4x256xf32>
    %41 = arith.addf %37, %40 : vector<4x256xf32>
    %c0_22 = arith.constant 0 : index
    %c0_23 = arith.constant 0 : index
    %42 = vector.load %arg12[%c0_22, %c0_23] : memref<4x256xf32, #tpu.memory_space<vmem>>, vector<4x256xf32>
    tpu.vector_store %arg12[%c0_22, %c0_23], %41 {strides = array<i32>} : memref<4x256xf32, #tpu.memory_space<vmem>>, vector<4x256xf32>,
    %c0_i32_24 = arith.constant 0 : i32
    %43 = arith.cmpi eq, %arg2, %c0_i32_24 : i32
    %44 = arith.extui %43 : i1 to i32
    %c0_i32_25 = arith.constant 0 : i32
    %45 = arith.cmpi ne, %44, %c0_i32_25 : i32
    scf.if %45 {
      %c0_26 = arith.constant 0 : index
      %c0_27 = arith.constant 0 : index
      %46 = vector.load %arg9[%c0_26, %c0_27] : memref<4x256xf32, #tpu.memory_space<vmem>>, vector<4x256xf32>
      %cst_28 = arith.constant dense<0.000000e+00> : vector<4xf32>
      %47 = vector.multi_reduction <add>, %46, %cst_28 [1] : vector<4x256xf32> to vector<4xf32>
      %48 = vector.shape_cast %47 : vector<4xf32> to vector<4x1xf32>
      %49 = vector.shape_cast %48 : vector<4x1xf32> to vector<1x1x4x1xf32>
      %c0_29 = arith.constant 0 : index
      %c0_30 = arith.constant 0 : index
      %c0_31 = arith.constant 0 : index
      %c0_32 = arith.constant 0 : index
      %50 = vector.load %arg5[%c0_29, %c0_30, %c0_31, %c0_32] : memref<1x1x4x1xf32, #tpu.memory_space<vmem>>, vector<1x1x4x1xf32>
      tpu.vector_store %arg5[%c0_29, %c0_30, %c0_31, %c0_32], %49 {strides = array<i32>} : memref<1x1x4x1xf32, #tpu.memory_space<vmem>>, vector<1x1x4x1xf32>,
      %c0_33 = arith.constant 0 : index
      %c0_34 = arith.constant 0 : index
      %51 = vector.load %arg10[%c0_33, %c0_34] : memref<4x256xf32, #tpu.memory_space<vmem>>, vector<4x256xf32>
      %cst_35 = arith.constant dense<0.000000e+00> : vector<4xf32>
      %52 = vector.multi_reduction <add>, %51, %cst_35 [1] : vector<4x256xf32> to vector<4xf32>
      %53 = vector.shape_cast %52 : vector<4xf32> to vector<4x1xf32>
      %54 = vector.shape_cast %53 : vector<4x1xf32> to vector<1x1x4x1xf32>
      %c0_36 = arith.constant 0 : index
      %c0_37 = arith.constant 0 : index
      %c0_38 = arith.constant 0 : index
      %c0_39 = arith.constant 0 : index
      %55 = vector.load %arg6[%c0_36, %c0_37, %c0_38, %c0_39] : memref<1x1x4x1xf32, #tpu.memory_space<vmem>>, vector<1x1x4x1xf32>
      tpu.vector_store %arg6[%c0_36, %c0_37, %c0_38, %c0_39], %54 {strides = array<i32>} : memref<1x1x4x1xf32, #tpu.memory_space<vmem>>, vector<1x1x4x1xf32>,
      %c0_40 = arith.constant 0 : index
      %c0_41 = arith.constant 0 : index
      %56 = vector.load %arg11[%c0_40, %c0_41] : memref<4x256xf32, #tpu.memory_space<vmem>>, vector<4x256xf32>
      %cst_42 = arith.constant dense<0.000000e+00> : vector<4xf32>
      %57 = vector.multi_reduction <add>, %56, %cst_42 [1] : vector<4x256xf32> to vector<4xf32>
      %58 = vector.shape_cast %57 : vector<4xf32> to vector<4x1xf32>
      %59 = vector.shape_cast %58 : vector<4x1xf32> to vector<1x1x4x1xf32>
      %c0_43 = arith.constant 0 : index
      %c0_44 = arith.constant 0 : index
      %c0_45 = arith.constant 0 : index
      %c0_46 = arith.constant 0 : index
      %60 = vector.load %arg7[%c0_43, %c0_44, %c0_45, %c0_46] : memref<1x1x4x1xf32, #tpu.memory_space<vmem>>, vector<1x1x4x1xf32>
      tpu.vector_store %arg7[%c0_43, %c0_44, %c0_45, %c0_46], %59 {strides = array<i32>} : memref<1x1x4x1xf32, #tpu.memory_space<vmem>>, vector<1x1x4x1xf32>,
      %c0_47 = arith.constant 0 : index
      %c0_48 = arith.constant 0 : index
      %61 = vector.load %arg12[%c0_47, %c0_48] : memref<4x256xf32, #tpu.memory_space<vmem>>, vector<4x256xf32>
      %cst_49 = arith.constant dense<0.000000e+00> : vector<4xf32>
      %62 = vector.multi_reduction <add>, %61, %cst_49 [1] : vector<4x256xf32> to vector<4xf32>
      %63 = vector.shape_cast %62 : vector<4xf32> to vector<4x1xf32>
      %cst_50 = arith.constant dense<0.000000e+00> : vector<1xf32>
      %64 = vector.multi_reduction <add>, %63, %cst_50 [0] : vector<4x1xf32> to vector<1xf32>
      %65 = vector.shape_cast %64 : vector<1xf32> to vector<1x1xf32>
      %66 = vector.shape_cast %65 : vector<1x1xf32> to vector<1x1x1x1xf32>
      %c0_51 = arith.constant 0 : index
      %c0_52 = arith.constant 0 : index
      %c0_53 = arith.constant 0 : index
      %c0_54 = arith.constant 0 : index
      %67 = vector.load %arg8[%c0_51, %c0_52, %c0_53, %c0_54] : memref<1x1x1x1xf32, #tpu.memory_space<vmem>>, vector<1x1x1x1xf32>
      tpu.vector_store %arg8[%c0_51, %c0_52, %c0_53, %c0_54], %66 {strides = array<i32>} : memref<1x1x1x1xf32, #tpu.memory_space<vmem>>, vector<1x1x1x1xf32>,
    } else {
    }
    return
  }
  func.func @transform_0(%arg0: i32, %arg1: i32, %arg2: i32) -> (i32, i32, i32) {
    %c1_i32 = arith.constant 1 : i32
    %0 = arith.muli %arg1, %c1_i32 : i32
    %1 = arith.addi %0, %arg2 : i32
    %c0_i32 = arith.constant 0 : i32
    %c0_i32_0 = arith.constant 0 : i32
    return %arg0, %c0_i32, %1 : i32, i32, i32
  }
  func.func @transform_1(%arg0: i32, %arg1: i32, %arg2: i32) -> (i32, i32, i32) {
    %c1_i32 = arith.constant 1 : i32
    %0 = arith.muli %arg1, %c1_i32 : i32
    %1 = arith.addi %0, %arg2 : i32
    %c0_i32 = arith.constant 0 : i32
    %c0_i32_0 = arith.constant 0 : i32
    return %arg0, %c0_i32, %1 : i32, i32, i32
  }
  func.func @transform_2(%arg0: i32, %arg1: i32, %arg2: i32) -> (i32, i32, i32, i32) {
    %c0_i32 = arith.constant 0 : i32
    %c0_i32_0 = arith.constant 0 : i32
    %c0_i32_1 = arith.constant 0 : i32
    return %arg0, %arg1, %c0_i32, %c0_i32_0 : i32, i32, i32, i32
  }
  func.func @transform_3(%arg0: i32, %arg1: i32, %arg2: i32) -> (i32, i32, i32, i32) {
    %c0_i32 = arith.constant 0 : i32
    %c0_i32_0 = arith.constant 0 : i32
    %c0_i32_1 = arith.constant 0 : i32
    return %arg0, %arg1, %c0_i32, %c0_i32_0 : i32, i32, i32, i32
  }
  func.func @transform_4(%arg0: i32, %arg1: i32, %arg2: i32) -> (i32, i32, i32, i32) {
    %c0_i32 = arith.constant 0 : i32
    %c0_i32_0 = arith.constant 0 : i32
    %c0_i32_1 = arith.constant 0 : i32
    return %arg0, %arg1, %c0_i32, %c0_i32_0 : i32, i32, i32, i32
  }
  func.func @transform_5(%arg0: i32, %arg1: i32, %arg2: i32) -> (i32, i32, i32, i32) {
    %c0_i32 = arith.constant 0 : i32
    %c0_i32_0 = arith.constant 0 : i32
    %c0_i32_1 = arith.constant 0 : i32
    return %arg0, %arg1, %c0_i32, %c0_i32_0 : i32, i32, i32, i32
  }
}

</mosaic_0001>

<llo_original>
// kernel: tpu_custom_call.1
$region0: #{tpu_custom_call.1}
  #allocation0 [shape = 'u32[]', space=smem, size = 0x4, offset = 0x4, fixed_abs, tag = 'smem constant byte address 0x4 - core index']
  #allocation1 [shape = 'u32[144,128]{1,0:T(1,128)}', space=vmem, size = 0x12000, scoped, tag = 'internal scratch']
  #allocation2 [shape = 'f32[4,256]{1,0:T(4,128)}', space=vmem, size = 0x1000, scoped, tag = 'scratch operand']
  #allocation3 [shape = 'f32[4,256]{1,0:T(4,128)}', space=vmem, size = 0x1000, scoped, tag = 'scratch operand']
  #allocation4 [shape = 'f32[4,256]{1,0:T(4,128)}', space=vmem, size = 0x1000, scoped, tag = 'scratch operand']
  #allocation5 [shape = 'f32[4,256]{1,0:T(4,128)}', space=vmem, size = 0x1000, scoped, tag = 'scratch operand']
  %s0 = inlined_call_operand.hbm [shape: f32[2,4,256], index: 0, kind: input, shape index: {}]
  %s1 = inlined_call_operand.hbm [shape: s32[2,1,256], index: 1, kind: input, shape index: {}]
  %s2 = inlined_call_operand.vmem [shape: f32[2,1,4,1], index: 2, kind: output, shape index: {0}]
  %s3 = inlined_call_operand.vmem [shape: f32[2,1,4,1], index: 3, kind: output, shape index: {1}]
  %s4 = inlined_call_operand.vmem [shape: f32[2,1,4,1], index: 4, kind: output, shape index: {2}]
  %s5 = inlined_call_operand.vmem [shape: f32[2,1,1,1], index: 5, kind: output, shape index: {3}]
  %6 = xla_tuple %s2, %s3, %s4, %s5
  %s7 = sld [smem:[#allocation0]]
  $region81: #{tpu_custom_call.1} parent=0
    _
  %s9 = ssub.s32 1, %s7
  %s10 = scalar_select 0, %s9, %s7
  $region1: #{tpu_custom_call.1} parent=0
    #allocation6 [shape = 'u8[8192]{0}', space=vmem, size = 0x2000, scoped, tag = 'input window, operand 0']
    #allocation7 [shape = 's32[2]{0}', space=sflag, size = 0x8, scoped, tag = 'scoped memory for tpu_custom_call.1']
    #allocation8 [shape = 'u8[2048]{0}', space=vmem, size = 0x800, scoped, tag = 'input window, operand 1']
    #allocation9 [shape = 's32[2]{0}', space=sflag, size = 0x8, scoped, tag = 'scoped memory for tpu_custom_call.1']
    %11 = vsyncpa [#allocation7], 0
    %s12 = scalar_lea.sflag [#allocation7], 1
    %13 = vsyncpa %s12, 0
    %14 = vsyncpa [#allocation9], 0
    %s15 = scalar_lea.sflag [#allocation9], 1
    %16 = vsyncpa %s15, 0
    loop: start=0, step=1, limit=4
    $region2: #{tpu_custom_call.1} parent=1 // loop_pre_header
      _
    $region3: #{tpu_custom_call.1} parent=1 // loop_header
      %s18 = sphi 0, %s22
      %p19 = scmp.ge.s32.totalorder %s18, 4
      %s25 = sphi 0, %s44
      %s26 = sphi 0, %s40
      %s27 = sphi 0, %s36
      %s28 = sphi 0, %s25
      %s29 = sphi 0, %s26
      %s30 = sphi 0, %s27
      %s31 = sphi 0, %s28
      %s32 = sphi 0, %s29
      %s33 = sphi 0, %s30
      %s51 = sphi 0, %s53
      %s54 = sphi 0, %s51
      %s55 = sphi 0, %s54
      %s71 = sphi 0, %s55
      %s81 = sphi 0, %s83
      %s84 = sphi 0, %s81
      %s85 = sphi 0, %s84
      %s101 = sphi 0, %s85
      %s109 = sphi 0, %s111
      %s112 = sphi 0, %s109
      %s113 = sphi 0, %s112
      %s129 = sphi 0, %s113
      %s137 = sphi 0, %s139
      %s140 = sphi 0, %s137
      %s141 = sphi 0, %s140
      %s157 = sphi 0, %s141
      %s165 = sphi 0, %s167
      %s168 = sphi 0, %s165
      %s169 = sphi 0, %s168
      %s185 = sphi 0, %s169
      %s193 = sphi 0, %s195
      %s196 = sphi 0, %s193
      %s197 = sphi 0, %s196
      %s213 = sphi 0, %s197
    $region4: #{tpu_custom_call.1} parent=1 // loop_header_branch
      %21 = sbr.rel (%p19) target = $region8
    $region5: #{tpu_custom_call.1} parent=1 // loop_body
      %s23 = ssub.s32 %s18, 1
      %s24 = ssub.s32 %s18, 2
      %s34 = sadd.s32 1, %s27
      %p35 = scmp.ge.s32.totalorder %s34, 1
      %s36 = scalar_select %p35, 0, %s34
      %s37 = sadd.s32 1, %s26
      %s38 = scalar_select %p35, %s37, %s26
      %p39 = scmp.ge.s32.totalorder %s38, 1
      %s40 = scalar_select %p39, 0, %s38
      %s41 = sadd.s32 1, %s25
      %s42 = scalar_select %p39, %s41, %s25
      %p43 = scmp.ge.s32.totalorder %s42, 2
      %s44 = scalar_select %p43, 0, %s42
      %s45 = sadd.s32 %s26, %s27
      %s46 = sadd.s32 %s40, %s36
      %s47 = ssub.s32 %s25, %s44
      %s48 = ssub.s32 %s45, %s46
      %s49 = sor.u32 %s47, %s48
      %p50 = scmp.eq.s32.totalorder %s49, 0
      %s52 = sadd.s32 %s51, 1
      %s53 = scalar_select %p50, %s51, %s52
      %p56 = pneg %p50
      %p57 = scmp.eq.s32.totalorder %s18, 1
      %p58 = por %p56, %p57
      %p59 = scmp.ne.s32.totalorder %s51, %s54
      %p60 = scmp.eq.s32.totalorder %s18, 0
      %p61 = por %p59, %p60
      %p62 = scmp.ne.s32.totalorder %s51, %s54
      %p63 = scmp.eq.s32.totalorder %s23, 1
      %p64 = por %p62, %p63
      %p65 = scmp.ne.s32.totalorder %s54, %s55
      %p66 = scmp.eq.s32.totalorder %s23, 0
      %p67 = por %p65, %p66
      %p68 = scmp.ne.s32.totalorder %s54, %s55
      %p69 = scmp.eq.s32.totalorder %s24, 1
      %p70 = por %p68, %p69
      %p72 = scmp.ne.s32.totalorder %s55, %s71
      %p73 = scmp.eq.s32.totalorder %s24, 0
      %p74 = por %p72, %p73
      %s75 = sadd.s32 %s26, %s27
      %s76 = sadd.s32 %s40, %s36
      %s77 = ssub.s32 %s25, %s44
      %s78 = ssub.s32 %s75, %s76
      %s79 = sor.u32 %s77, %s78
      %p80 = scmp.eq.s32.totalorder %s79, 0
      %s82 = sadd.s32 %s81, 1
      %s83 = scalar_select %p80, %s81, %s82
      %p86 = pneg %p80
      %p87 = scmp.eq.s32.totalorder %s18, 1
      %p88 = por %p86, %p87
      %p89 = scmp.ne.s32.totalorder %s81, %s84
      %p90 = scmp.eq.s32.totalorder %s18, 0
      %p91 = por %p89, %p90
      %p92 = scmp.ne.s32.totalorder %s81, %s84
      %p93 = scmp.eq.s32.totalorder %s23, 1
      %p94 = por %p92, %p93
      %p95 = scmp.ne.s32.totalorder %s84, %s85
      %p96 = scmp.eq.s32.totalorder %s23, 0
      %p97 = por %p95, %p96
      %p98 = scmp.ne.s32.totalorder %s84, %s85
      %p99 = scmp.eq.s32.totalorder %s24, 1
      %p100 = por %p98, %p99
      %p102 = scmp.ne.s32.totalorder %s85, %s101
      %p103 = scmp.eq.s32.totalorder %s24, 0
      %p104 = por %p102, %p103
      %s105 = ssub.s32 %s25, %s44
      %s106 = ssub.s32 %s26, %s40
      %s107 = sor.u32 %s105, %s106
      %p108 = scmp.eq.s32.totalorder %s107, 0
      %s110 = sadd.s32 %s109, 1
      %s111 = scalar_select %p108, %s109, %s110
      %p114 = pneg %p108
      %p115 = scmp.eq.s32.totalorder %s18, 1
      %p116 = por %p114, %p115
      %p117 = scmp.ne.s32.totalorder %s109, %s112
      %p118 = scmp.eq.s32.totalorder %s18, 0
      %p119 = por %p117, %p118
      %p120 = scmp.ne.s32.totalorder %s109, %s112
      %p121 = scmp.eq.s32.totalorder %s23, 1
      %p122 = por %p120, %p121
      %p123 = scmp.ne.s32.totalorder %s112, %s113
      %p124 = scmp.eq.s32.totalorder %s23, 0
      %p125 = por %p123, %p124
      %p126 = scmp.ne.s32.totalorder %s112, %s113
      %p127 = scmp.eq.s32.totalorder %s24, 1
      %p128 = por %p126, %p127
      %p130 = scmp.ne.s32.totalorder %s113, %s129
      %p131 = scmp.eq.s32.totalorder %s24, 0
      %p132 = por %p130, %p131
      %s133 = ssub.s32 %s25, %s44
      %s134 = ssub.s32 %s26, %s40
      %s135 = sor.u32 %s133, %s134
      %p136 = scmp.eq.s32.totalorder %s135, 0
      %s138 = sadd.s32 %s137, 1
      %s139 = scalar_select %p136, %s137, %s138
      %p142 = pneg %p136
      %p143 = scmp.eq.s32.totalorder %s18, 1
      %p144 = por %p142, %p143
      %p145 = scmp.ne.s32.totalorder %s137, %s140
      %p146 = scmp.eq.s32.totalorder %s18, 0
      %p147 = por %p145, %p146
      %p148 = scmp.ne.s32.totalorder %s137, %s140
      %p149 = scmp.eq.s32.totalorder %s23, 1
      %p150 = por %p148, %p149
      %p151 = scmp.ne.s32.totalorder %s140, %s141
      %p152 = scmp.eq.s32.totalorder %s23, 0
      %p153 = por %p151, %p152
      %p154 = scmp.ne.s32.totalorder %s140, %s141
      %p155 = scmp.eq.s32.totalorder %s24, 1
      %p156 = por %p154, %p155
      %p158 = scmp.ne.s32.totalorder %s141, %s157
      %p159 = scmp.eq.s32.totalorder %s24, 0
      %p160 = por %p158, %p159
      %s161 = ssub.s32 %s25, %s44
      %s162 = ssub.s32 %s26, %s40
      %s163 = sor.u32 %s161, %s162
      %p164 = scmp.eq.s32.totalorder %s163, 0
      %s166 = sadd.s32 %s165, 1
      %s167 = scalar_select %p164, %s165, %s166
      %p170 = pneg %p164
      %p171 = scmp.eq.s32.totalorder %s18, 1
      %p172 = por %p170, %p171
      %p173 = scmp.ne.s32.totalorder %s165, %s168
      %p174 = scmp.eq.s32.totalorder %s18, 0
      %p175 = por %p173, %p174
      %p176 = scmp.ne.s32.totalorder %s165, %s168
      %p177 = scmp.eq.s32.totalorder %s23, 1
      %p178 = por %p176, %p177
      %p179 = scmp.ne.s32.totalorder %s168, %s169
      %p180 = scmp.eq.s32.totalorder %s23, 0
      %p181 = por %p179, %p180
      %p182 = scmp.ne.s32.totalorder %s168, %s169
      %p183 = scmp.eq.s32.totalorder %s24, 1
      %p184 = por %p182, %p183
      %p186 = scmp.ne.s32.totalorder %s169, %s185
      %p187 = scmp.eq.s32.totalorder %s24, 0
      %p188 = por %p186, %p187
      %s189 = ssub.s32 %s25, %s44
      %s190 = ssub.s32 %s26, %s40
      %s191 = sor.u32 %s189, %s190
      %p192 = scmp.eq.s32.totalorder %s191, 0
      %s194 = sadd.s32 %s193, 1
      %s195 = scalar_select %p192, %s193, %s194
      %p198 = pneg %p192
      %p199 = scmp.eq.s32.totalorder %s18, 1
      %p200 = por %p198, %p199
      %p201 = scmp.ne.s32.totalorder %s193, %s196
      %p202 = scmp.eq.s32.totalorder %s18, 0
      %p203 = por %p201, %p202
      %p204 = scmp.ne.s32.totalorder %s193, %s196
      %p205 = scmp.eq.s32.totalorder %s23, 1
      %p206 = por %p204, %p205
      %p207 = scmp.ne.s32.totalorder %s196, %s197
      %p208 = scmp.eq.s32.totalorder %s23, 0
      %p209 = por %p207, %p208
      %p210 = scmp.ne.s32.totalorder %s196, %s197
      %p211 = scmp.eq.s32.totalorder %s24, 1
      %p212 = por %p210, %p211
      %p214 = scmp.ne.s32.totalorder %s197, %s213
      %p215 = scmp.eq.s32.totalorder %s24, 0
      %p216 = por %p214, %p215
      %p217 = scmp.le.s32.totalorder 1, %s18
      %p218 = scmp.lt.s32.totalorder %s18, 3
      %p219 = pnand %p217, %p218
      %p220 = pneg %p219
      // Predicated region
      $region9: #{tpu_custom_call.1} parent=5 // pred_check
        _
      $region10: #{tpu_custom_call.1} parent=5 // pred_check_branch
        %222 = sbr.rel (%p219) target = $region12
      $region11: #{tpu_custom_call.1} parent=5 // pred_region
        %s223 = ssub.s32 %s18, 1
      $region12: #{tpu_custom_call.1} parent=5 // pred_fallthru
        _
      %p224 = scmp.lt.s32.totalorder %s18, 2
      // Predicated region
      $region13: #{tpu_custom_call.1} parent=5 // pred_check
        %p225 = pneg %p224
      $region14: #{tpu_custom_call.1} parent=5 // pred_check_branch
        %227 = sbr.rel (%p225) target = $region16
      $region15: #{tpu_custom_call.1} parent=5 // pred_region
        // Predicated region
        $region17: #{tpu_custom_call.1} parent=15 // pred_check
          %p228 = pneg %p61
        $region18: #{tpu_custom_call.1} parent=15 // pred_check_branch
          %230 = sbr.rel (%p228) target = $region20
        $region19: #{tpu_custom_call.1} parent=15 // pred_region
          %s231 = sand.u32 %s51, 1
          %s232 = scalar_lea.sflag [#allocation7], %s231
          %s233 = sand.u32 %s51, 1
          %s234 = smul.addr %s233, 8
          %s235 = scalar_lea.vmem [#allocation6], %s234
          %s236 = sadd.s32 %s26, %s27
          %s237 = smul.u32 2, %s236
          %s239 = ssub.s32 128, 128
          %240 = vsyncadd %s232, %s239
          %s241 = smul.addr %s25, 2
          %s242 = sadd.s32 %s237, %s241
          %s243 = smul.addr %s242, 64
          %s244 = scalar_lea.hbm %s0, %s243
          %s246 = sshll.u32 %s235, 4
          %s247 = int_to_ptr.vmem [resolvable:$true] %s246
          %249 = dma.hbm_to_vmem [thread:$0]  %s244, 128, %s247, %s232
        $region20: #{tpu_custom_call.1} parent=15 // pred_fallthru
          _
        // Predicated region
        $region21: #{tpu_custom_call.1} parent=15 // pred_check
          %p250 = pneg %p91
        $region22: #{tpu_custom_call.1} parent=15 // pred_check_branch
          %252 = sbr.rel (%p250) target = $region24
        $region23: #{tpu_custom_call.1} parent=15 // pred_region
          %s253 = sand.u32 %s81, 1
          %s254 = scalar_lea.sflag [#allocation9], %s253
          %s255 = sand.u32 %s81, 1
          %s256 = smul.addr %s255, 2
          %s257 = scalar_lea.vmem [#allocation8], %s256
          %s258 = sadd.s32 %s26, %s27
          %s259 = smul.u32 2, %s258
          %s261 = ssub.s32 32, 32
          %262 = vsyncadd %s254, %s261
          %s263 = smul.addr %s25, 2
          %s264 = sadd.s32 %s259, %s263
          %s265 = smul.addr %s264, 16
          %s266 = scalar_lea.hbm %s1, %s265
          %s268 = sshll.u32 %s257, 4
          %s269 = int_to_ptr.vmem [resolvable:$true] %s268
          %271 = dma.hbm_to_vmem [thread:$0]  %s266, 32, %s269, %s254
        $region24: #{tpu_custom_call.1} parent=15 // pred_fallthru
          _
      $region16: #{tpu_custom_call.1} parent=5 // pred_fallthru
        _
      %p272 = scmp.le.s32.totalorder 1, %s18
      %p273 = scmp.lt.s32.totalorder %s18, 3
      %p274 = pnand %p272, %p273
      %p275 = pneg %p274
      // Predicated region
      $region25: #{tpu_custom_call.1} parent=5 // pred_check
        _
      $region26: #{tpu_custom_call.1} parent=5 // pred_check_branch
        %277 = sbr.rel (%p274) target = $region28
      $region27: #{tpu_custom_call.1} parent=5 // pred_region
        %s278 = ssub.s32 %s18, 1
        %s279 = sand.u32 %s54, 1
        %s280 = scalar_lea.sflag [#allocation7], %s279
        %s281 = sand.u32 %s54, 1
        %s282 = smul.addr %s281, 8
        %s283 = scalar_lea.vmem [#allocation6], %s282
        // Predicated region
        $region29: #{tpu_custom_call.1} parent=27 // pred_check
          %p284 = pneg %p67
        $region30: #{tpu_custom_call.1} parent=27 // pred_check_branch
          %286 = sbr.rel (%p284) target = $region32
        $region31: #{tpu_custom_call.1} parent=27 // pred_region
          %287 = dma.done %s280, 128
        $region32: #{tpu_custom_call.1} parent=27 // pred_fallthru
          _
        %s288 = sand.u32 %s84, 1
        %s289 = scalar_lea.sflag [#allocation9], %s288
        %s290 = sand.u32 %s84, 1
        %s291 = smul.addr %s290, 2
        %s292 = scalar_lea.vmem [#allocation8], %s291
        // Predicated region
        $region33: #{tpu_custom_call.1} parent=27 // pred_check
          %p293 = pneg %p97
        $region34: #{tpu_custom_call.1} parent=27 // pred_check_branch
          %295 = sbr.rel (%p293) target = $region36
        $region35: #{tpu_custom_call.1} parent=27 // pred_region
          %296 = dma.done %s289, 32
        $region36: #{tpu_custom_call.1} parent=27 // pred_fallthru
          _
        %s297 = sand.u32 %s54, 1
        %s298 = scalar_lea.sflag [#allocation7], %s297
        %s299 = sand.u32 %s54, 1
        %s300 = smul.addr %s299, 8
        %s301 = scalar_lea.vmem [#allocation6], %s300
        %p302 = pneg %p67
        %p303 = pneg %p64
        %s304 = sand.u32 %s84, 1
        %s305 = scalar_lea.sflag [#allocation9], %s304
        %s306 = sand.u32 %s84, 1
        %s307 = smul.addr %s306, 2
        %s308 = scalar_lea.vmem [#allocation8], %s307
        %p309 = pneg %p97
        %p310 = pneg %p94
        %p311 = pneg %p125
        %p312 = pneg %p122
        %p313 = scmp.lt.s32.totalorder %s28, 1
        %s314 = scalar_select %p313, %s28, 1
        %p315 = scmp.lt.s32.totalorder %s29, 0
        %s316 = scalar_select %p315, %s29, 0
        %s317 = sadd.s32 %s316, %s314
        %s318 = smul.addr %s317, 4
        %s319 = scalar_lea.vmem %s2, %s318
        %p320 = pneg %p153
        %p321 = pneg %p150
        %p322 = scmp.lt.s32.totalorder %s28, 1
        %s323 = scalar_select %p322, %s28, 1
        %p324 = scmp.lt.s32.totalorder %s29, 0
        %s325 = scalar_select %p324, %s29, 0
        %s326 = sadd.s32 %s325, %s323
        %s327 = smul.addr %s326, 4
        %s328 = scalar_lea.vmem %s3, %s327
        %p329 = pneg %p181
        %p330 = pneg %p178
        %p331 = scmp.lt.s32.totalorder %s28, 1
        %s332 = scalar_select %p331, %s28, 1
        %p333 = scmp.lt.s32.totalorder %s29, 0
        %s334 = scalar_select %p333, %s29, 0
        %s335 = sadd.s32 %s334, %s332
        %s336 = smul.addr %s335, 4
        %s337 = scalar_lea.vmem %s4, %s336
        %p338 = pneg %p209
        %p339 = pneg %p206
        %p340 = scmp.lt.s32.totalorder %s28, 1
        %s341 = scalar_select %p340, %s28, 1
        %p342 = scmp.lt.s32.totalorder %s29, 0
        %s343 = scalar_select %p342, %s29, 0
        %s344 = sadd.s32 %s343, %s341
        %s345 = scalar_lea.vmem %s5, %s344
        %s346 = sadd.s32 %s29, %s30
        %s347 = smul.u32 2, %s346
        %s348 = sadd.s32 %s29, %s30
        %s349 = smul.u32 2, %s348
        %p350 = scmp.lt.s32.totalorder %s28, 1
        %s351 = scalar_select %p350, %s28, 1
        %p352 = scmp.lt.s32.totalorder %s29, 0
        %s353 = scalar_select %p352, %s29, 0
        %s354 = sadd.s32 %s353, %s351
        %s355 = smul.addr %s354, 4
        %s356 = scalar_lea.vmem %s2, %s355
        %p357 = scmp.lt.s32.totalorder %s28, 1
        %s358 = scalar_select %p357, %s28, 1
        %p359 = scmp.lt.s32.totalorder %s29, 0
        %s360 = scalar_select %p359, %s29, 0
        %s361 = sadd.s32 %s360, %s358
        %s362 = smul.addr %s361, 4
        %s363 = scalar_lea.vmem %s3, %s362
        %p364 = scmp.lt.s32.totalorder %s28, 1
        %s365 = scalar_select %p364, %s28, 1
        %p366 = scmp.lt.s32.totalorder %s29, 0
        %s367 = scalar_select %p366, %s29, 0
        %s368 = sadd.s32 %s367, %s365
        %s369 = smul.addr %s368, 4
        %s370 = scalar_lea.vmem %s4, %s369
        %p371 = scmp.lt.s32.totalorder %s28, 1
        %s372 = scalar_select %p371, %s28, 1
        %p373 = scmp.lt.s32.totalorder %s29, 0
        %s374 = scalar_select %p373, %s29, 0
        %s375 = sadd.s32 %s374, %s372
        %s376 = scalar_lea.vmem %s5, %s375
        %p377 = scmp.eq.s32.totalorder %s30, 0
        // Predicated region
        $region37: #{tpu_custom_call.1} parent=27 // pred_check
          %p378 = pneg %p377
        $region38: #{tpu_custom_call.1} parent=27 // pred_check_branch
          %380 = sbr.rel (%p378) target = $region40
        $region39: #{tpu_custom_call.1} parent=27 // pred_region
          %381 = vst [vmem:[#allocation2] sm:$0xff] 0.0
          %382 = vst [vmem:[#allocation3] sm:$0xff] 0.0
          %383 = vst [vmem:[#allocation4] sm:$0xff] 0.0
          %384 = vst [vmem:[#allocation5] sm:$0xff] 0.0
        $region40: #{tpu_custom_call.1} parent=27 // pred_fallthru
          _
        %v385 = vld [vmem:[%s283] sm:$0xff]
        %v386 = vld [vmem:[%s292] sm:$0x3]
        %v387 = vlaneseq
        %v388 = vshrl.u32 %v387, 7
        %v389 = vlaneseq
        %v390 = vshrl.u32 %v389, 7
        %v391 = vsub.s32 0, %v390
        %v392 = vrot.slane %v386, %v391
        %v393 = vlaneseq
        %v394 = vshrl.u32 %v393, 7
        %v395 = vsub.s32 1, %v394
        %v396 = vrot.slane %v386, %v395
        %vm397 = vcmp.eq.s32.totalorder %v388, %v392
        %vm398 = vcmp.eq.s32.totalorder %v388, %v396
        %v399 = vsel %vm397, 1, 0
        %v400 = vsel %vm398, 1, 0
        %v401 = vcvt.s32.f32 %v399
        %v402 = vcvt.s32.f32 %v400
        %v404 = vcombine.high %v385, %v385
        %vm406 = vcmask 1043456
        %v407 = vsel %vm406, %v385, -inf
        %v408 = vrot.slane %v407, 4
        %v409 = vmax.f32 %v407, %v408
        %v410 = vrot.slane %v409, 2
        %v411 = vmax.f32 %v409, %v410
        %v412 = vrot.slane %v411, 1
        %v413 = vmax.f32 %v411, %v412
        %v414 = vsel %vm406, %v404, -inf
        %v415 = vrot.slane %v414, 4
        %v416 = vmax.f32 %v414, %v415
        %v417 = vrot.slane %v416, 2
        %v418 = vmax.f32 %v416, %v417
        %v419 = vrot.slane %v418, 1
        %v420 = vmax.f32 %v418, %v419
        %v423 = vcombine.low %v413, %v420
        %v425 = vsub.f32 %v385, %v423
        %v426 = vmul.f32 %v425, 1.442695
        %v427 = vpow.pop %v426
        %v429 = vcombine.high %v427, %v427
        %v431 = vsel %vm406, %v427, 0.0
        %v432 = vrot.slane %v431, 4
        %v433 = vadd.f32 %v431, %v432
        %v434 = vrot.slane %v433, 2
        %v435 = vadd.f32 %v433, %v434
        %v436 = vrot.slane %v435, 1
        %v437 = vadd.f32 %v435, %v436
        %v438 = vsel %vm406, %v429, 0.0
        %v439 = vrot.slane %v438, 4
        %v440 = vadd.f32 %v438, %v439
        %v441 = vrot.slane %v440, 2
        %v442 = vadd.f32 %v440, %v441
        %v443 = vrot.slane %v442, 1
        %v444 = vadd.f32 %v442, %v443
        %v445 = vrcp.pop %v437
        %v446 = vrcp.pop %v444
        %v449 = vcombine.low %v445, %v446
        %v451 = vmul.f32 %v427, %v449
        %v452 = vlog2.pop %v437
        %v453 = vmul.f32 %v452, 0.6931472
        %v454 = vlog2.pop %v444
        %v455 = vmul.f32 %v454, 0.6931472
        %v457 = vcombine.high %v425, %v425
        %v459 = vsub.f32 %v453, %v425
        %v460 = vsub.f32 %v455, %v457
        %v461 = vld [vmem:[#allocation2] sm:$0xff]
        %v464 = vcombine.low %v401, %v402
        %v466 = vmul.f32 %v451, %v464
        %v467 = vadd.f32 %v461, %v466
        %468 = vst [vmem:[#allocation2] sm:$0xff] %v467
        %v469 = vld [vmem:[#allocation3] sm:$0xff]
        %v470 = vadd.f32 %v469, %v451
        %471 = vst [vmem:[#allocation3] sm:$0xff] %v470
        %v472 = vld [vmem:[#allocation4] sm:$0xff]
        %v473 = vadd.f32 %v472, %v464
        %474 = vst [vmem:[#allocation4] sm:$0xff] %v473
        %v475 = vsub.f32 1.0, %v451
        %v476 = vld [vmem:[#allocation5] sm:$0xff]
        %v477 = vmul.f32 %v475, %v475
        %v480 = vcombine.low %v459, %v460
        %v482 = vmul.f32 %v477, %v480
        %v483 = vmul.f32 %v482, %v464
        %v484 = vadd.f32 %v476, %v483
        %485 = vst [vmem:[#allocation5] sm:$0xff] %v484
        // Predicated region
        $region41: #{tpu_custom_call.1} parent=27 // pred_check
          %p486 = pneg %p377
        $region42: #{tpu_custom_call.1} parent=27 // pred_check_branch
          %488 = sbr.rel (%p486) target = $region44
        $region43: #{tpu_custom_call.1} parent=27 // pred_region
          %v489 = vld [vmem:[#allocation2] sm:$0xff]
          %v491 = vcombine.high %v489, %v489
          %v493 = vsel %vm406, %v489, 0.0
          %v494 = vsel %vm406, %v491, 0.0
          %v495 = vadd.f32 %v493, %v494
          %496 = vadd.xlane.f32.xlu0 %v495
          %v497 = vpop.xlane.xlu0 %496
          %vm498 = vcmask 3072
          %499 = vst.msk [vmem:[%s356] sm:$0xf] %vm498, %v497
          %v500 = vld [vmem:[#allocation3] sm:$0xff]
          %v502 = vcombine.high %v500, %v500
          %v504 = vsel %vm406, %v500, 0.0
          %v505 = vsel %vm406, %v502, 0.0
          %v506 = vadd.f32 %v504, %v505
          %507 = vadd.xlane.f32.xlu0 %v506
          %v508 = vpop.xlane.xlu0 %507
          %509 = vst.msk [vmem:[%s363] sm:$0xf] %vm498, %v508
          %v510 = vld [vmem:[#allocation4] sm:$0xff]
          %v512 = vcombine.high %v510, %v510
          %v514 = vsel %vm406, %v510, 0.0
          %v515 = vsel %vm406, %v512, 0.0
          %v516 = vadd.f32 %v514, %v515
          %517 = vadd.xlane.f32.xlu0 %v516
          %v518 = vpop.xlane.xlu0 %517
          %519 = vst.msk [vmem:[%s370] sm:$0xf] %vm498, %v518
          %v520 = vld [vmem:[#allocation5] sm:$0xff]
          %v522 = vcombine.high %v520, %v520
          %v524 = vsel %vm406, %v520, 0.0
          %v525 = vsel %vm406, %v522, 0.0
          %v526 = vadd.f32 %v524, %v525
          %527 = vadd.xlane.f32.xlu0 %v526
          %v528 = vpop.xlane.xlu0 %527
          %v529 = vsel %vm406, %v528, 0.0
          %v530 = vrot.slane %v529, 4
          %v531 = vadd.f32 %v529, %v530
          %v532 = vrot.slane %v531, 2
          %v533 = vadd.f32 %v531, %v532
          %v534 = vrot.slane %v533, 1
          %v535 = vadd.f32 %v533, %v534
          %vm536 = vcmask 0
          %537 = vst.msk [vmem:[%s376] sm:$0x1] %vm536, %v535
        $region44: #{tpu_custom_call.1} parent=27 // pred_fallthru
          _
        %p538 = scmp.lt.s32.totalorder %s28, 1
        %s539 = scalar_select %p538, %s28, 1
        %p540 = scmp.lt.s32.totalorder %s29, 0
        %s541 = scalar_select %p540, %s29, 0
        %s542 = sadd.s32 %s541, %s539
        %s543 = smul.addr %s542, 4
        %s544 = scalar_lea.vmem %s2, %s543
        %p545 = scmp.lt.s32.totalorder %s28, 1
        %s546 = scalar_select %p545, %s28, 1
        %p547 = scmp.lt.s32.totalorder %s29, 0
        %s548 = scalar_select %p547, %s29, 0
        %s549 = sadd.s32 %s548, %s546
        %s550 = smul.addr %s549, 4
        %s551 = scalar_lea.vmem %s3, %s550
        %p552 = scmp.lt.s32.totalorder %s28, 1
        %s553 = scalar_select %p552, %s28, 1
        %p554 = scmp.lt.s32.totalorder %s29, 0
        %s555 = scalar_select %p554, %s29, 0
        %s556 = sadd.s32 %s555, %s553
        %s557 = smul.addr %s556, 4
        %s558 = scalar_lea.vmem %s4, %s557
        %p559 = scmp.lt.s32.totalorder %s28, 1
        %s560 = scalar_select %p559, %s28, 1
        %p561 = scmp.lt.s32.totalorder %s29, 0
        %s562 = scalar_select %p561, %s29, 0
        %s563 = sadd.s32 %s562, %s560
        %s564 = scalar_lea.vmem %s5, %s563
        // Predicated region
        $region45: #{tpu_custom_call.1} parent=27 // pred_check
          %p565 = pneg %p122
        $region46: #{tpu_custom_call.1} parent=27 // pred_check_branch
          %567 = sbr.rel (%p565) target = $region48
        $region47: #{tpu_custom_call.1} parent=27 // pred_region
          _
        $region48: #{tpu_custom_call.1} parent=27 // pred_fallthru
          _
        // Predicated region
        $region49: #{tpu_custom_call.1} parent=27 // pred_check
          %p568 = pneg %p150
        $region50: #{tpu_custom_call.1} parent=27 // pred_check_branch
          %570 = sbr.rel (%p568) target = $region52
        $region51: #{tpu_custom_call.1} parent=27 // pred_region
          _
        $region52: #{tpu_custom_call.1} parent=27 // pred_fallthru
          _
        // Predicated region
        $region53: #{tpu_custom_call.1} parent=27 // pred_check
          %p571 = pneg %p178
        $region54: #{tpu_custom_call.1} parent=27 // pred_check_branch
          %573 = sbr.rel (%p571) target = $region56
        $region55: #{tpu_custom_call.1} parent=27 // pred_region
          _
        $region56: #{tpu_custom_call.1} parent=27 // pred_fallthru
          _
        // Predicated region
        $region57: #{tpu_custom_call.1} parent=27 // pred_check
          %p574 = pneg %p206
        $region58: #{tpu_custom_call.1} parent=27 // pred_check_branch
          %576 = sbr.rel (%p574) target = $region60
        $region59: #{tpu_custom_call.1} parent=27 // pred_region
          _
        $region60: #{tpu_custom_call.1} parent=27 // pred_fallthru
          _
      $region28: #{tpu_custom_call.1} parent=5 // pred_fallthru
        _
      %p577 = scmp.le.s32.totalorder 2, %s18
      // Predicated region
      $region61: #{tpu_custom_call.1} parent=5 // pred_check
        %p578 = pneg %p577
      $region62: #{tpu_custom_call.1} parent=5 // pred_check_branch
        %580 = sbr.rel (%p578) target = $region64
      $region63: #{tpu_custom_call.1} parent=5 // pred_region
        %s581 = ssub.s32 %s18, 2
        // Predicated region
        $region65: #{tpu_custom_call.1} parent=63 // pred_check
          %p582 = pneg %p128
        $region66: #{tpu_custom_call.1} parent=63 // pred_check_branch
          %584 = sbr.rel (%p582) target = $region68
        $region67: #{tpu_custom_call.1} parent=63 // pred_region
          %p585 = scmp.lt.s32.totalorder %s31, 1
          %s586 = scalar_select %p585, %s31, 1
          %p587 = scmp.lt.s32.totalorder %s32, 0
          %s588 = scalar_select %p587, %s32, 0
          %s589 = sadd.s32 %s588, %s586
          %s590 = smul.addr %s589, 4
          %s591 = scalar_lea.vmem %s2, %s590
        $region68: #{tpu_custom_call.1} parent=63 // pred_fallthru
          _
        // Predicated region
        $region69: #{tpu_custom_call.1} parent=63 // pred_check
          %p592 = pneg %p156
        $region70: #{tpu_custom_call.1} parent=63 // pred_check_branch
          %594 = sbr.rel (%p592) target = $region72
        $region71: #{tpu_custom_call.1} parent=63 // pred_region
          %p595 = scmp.lt.s32.totalorder %s31, 1
          %s596 = scalar_select %p595, %s31, 1
          %p597 = scmp.lt.s32.totalorder %s32, 0
          %s598 = scalar_select %p597, %s32, 0
          %s599 = sadd.s32 %s598, %s596
          %s600 = smul.addr %s599, 4
          %s601 = scalar_lea.vmem %s3, %s600
        $region72: #{tpu_custom_call.1} parent=63 // pred_fallthru
          _
        // Predicated region
        $region73: #{tpu_custom_call.1} parent=63 // pred_check
          %p602 = pneg %p184
        $region74: #{tpu_custom_call.1} parent=63 // pred_check_branch
          %604 = sbr.rel (%p602) target = $region76
        $region75: #{tpu_custom_call.1} parent=63 // pred_region
          %p605 = scmp.lt.s32.totalorder %s31, 1
          %s606 = scalar_select %p605, %s31, 1
          %p607 = scmp.lt.s32.totalorder %s32, 0
          %s608 = scalar_select %p607, %s32, 0
          %s609 = sadd.s32 %s608, %s606
          %s610 = smul.addr %s609, 4
          %s611 = scalar_lea.vmem %s4, %s610
        $region76: #{tpu_custom_call.1} parent=63 // pred_fallthru
          _
        // Predicated region
        $region77: #{tpu_custom_call.1} parent=63 // pred_check
          %p612 = pneg %p212
        $region78: #{tpu_custom_call.1} parent=63 // pred_check_branch
          %614 = sbr.rel (%p612) target = $region80
        $region79: #{tpu_custom_call.1} parent=63 // pred_region
          %p615 = scmp.lt.s32.totalorder %s31, 1
          %s616 = scalar_select %p615, %s31, 1
          %p617 = scmp.lt.s32.totalorder %s32, 0
          %s618 = scalar_select %p617, %s32, 0
          %s619 = sadd.s32 %s618, %s616
          %s620 = scalar_lea.vmem %s5, %s619
        $region80: #{tpu_custom_call.1} parent=63 // pred_fallthru
          _
      $region64: #{tpu_custom_call.1} parent=5 // pred_fallthru
        _
    $region6: #{tpu_custom_call.1} parent=1 // loop_footer
      %s22 = sadd.s32 1, %s18
    $region7: #{tpu_custom_call.1} parent=1 // loop_footer_branch
      %17 = sbr.rel target = $region3
    $region8: #{tpu_custom_call.1} parent=1 // loop_exit
      _
    %621 = vsyncpa [#allocation7], 1
    %s622 = scalar_lea.sflag [#allocation7], 1
    %623 = vsyncpa %s622, 1
    %624 = vsyncpa [#allocation9], 1
    %s625 = scalar_lea.sflag [#allocation9], 1
    %626 = vsyncpa %s625, 1

</llo_original>
